<compile_context>
chip_gen: v7x
topology: tpu7x:2x2x1
jax: 0.10.0
libtpu: 0.0.40
codegen_flags: <defaults>
</compile_context>

<pallas_src>
import jax
import jax.numpy as jnp
from jax.experimental import pallas as pl
from jax.experimental.pallas import tpu as pltpu

_LANE = 128
_SUBLANE = 8
_V7X_VMEM_BYTES = 64 * 1024 * 1024  # smallest physical VMEM across v5e/v6e/v7x


def _round_up(x, m):
    return ((x + m - 1) // m) * m


def mlp_kernel(x_ref, w1_ref, b1_ref, w2_ref, b2_ref, o_ref):
    # fc1: (TB, In) @ (In, H) -> f32 accumulation on the MXU.
    h = jnp.dot(x_ref[...], w1_ref[...], preferred_element_type=jnp.float32)
    # bias + ReLU in f32 on the VPU (no bf16-VPU dependency -> v5e-safe).
    h = jnp.maximum(h + b1_ref[...], 0.0)
    # fc2: cast hidden to w2's matmul dtype (bf16 or f32), accumulate in f32.
    h = h.astype(w2_ref.dtype)
    out = jnp.dot(h, w2_ref[...], preferred_element_type=jnp.float32)
    out = out + b2_ref[...]
    o_ref[...] = out.astype(o_ref.dtype)


def prepare_params(w1, b1, w2, b2, *, matmul_dtype=jnp.float32):
    """One-time parameter preparation (hoisted out of the per-call wrapper).

    Pads the output dim up to a multiple of 128 lanes (lane-dense, unmasked
    stores), reshapes/casts biases to f32 row vectors, and casts weights to the
    MXU operand dtype (bf16 halves weight DMA bytes on v5e/v6e/v7x alike).
    """
    In, H = w1.shape
    Out = w2.shape[1]
    Out_p = _round_up(Out, _LANE)
    if Out_p != Out:
        w2 = jnp.pad(w2, ((0, 0), (0, Out_p - Out)))
        b2 = jnp.pad(jnp.reshape(b2, (-1,)), (0, Out_p - Out))
    # TODO(synk): fp8 weight path (per-tensor scales applied in f32 post-matmul,
    # bf16 activations) for v7x inference once H/Out reach real model sizes.
    return dict(
        w1=w1.astype(matmul_dtype),
        b1=jnp.reshape(b1, (1, H)).astype(jnp.float32),
        w2=w2.astype(matmul_dtype),
        b2=jnp.reshape(b2, (1, Out_p)).astype(jnp.float32),
        out=Out,
        out_p=Out_p,
    )


def mlp_forward(x, params, *, block_b=1024, out_dtype=jnp.float32,
                keep_padded=False):
    """Fused MLP forward.  x: (B, In); params from prepare_params()."""
    w1, b1, w2, b2 = params["w1"], params["b1"], params["w2"], params["b2"]
    Out, Out_p = params["out"], params["out_p"]
    B, In = x.shape
    H = w1.shape[1]
    x = x.astype(w1.dtype)

    if B <= 64:
        # Tiny batch: no grid, no software pipeline; whole operands in VMEM.
        out_p = pl.pallas_call(
            mlp_kernel,
            out_shape=jax.ShapeDtypeStruct((B, Out_p), out_dtype),
            in_specs=[pl.BlockSpec(memory_space=pltpu.MemorySpace.VMEM)] * 5,
            out_specs=pl.BlockSpec(memory_space=pltpu.MemorySpace.VMEM),
        )(x, w1, b1, w2, b2)
    else:
        # Batch-tiled, weight-stationary path.  Always >=2 tiles so the
        # "parallel" batch axis can shard across v7x's two TensorCores; the
        # ragged last tile is handled by Pallas' masked OOB writes (no jnp.pad).
        eff_block = min(block_b, _round_up(pl.cdiv(B, 2), _SUBLANE))
        grid = (pl.cdiv(B, eff_block),)

        # Explicit VMEM budget: resident weights/biases + double-buffered
        # x/out tiles + f32 intermediates, with 2x headroom, capped at v7x 64MiB.
        mm_bytes = jnp.dtype(w1.dtype).itemsize
        o_bytes = jnp.dtype(out_dtype).itemsize
        need = (In * H * mm_bytes + H * Out_p * mm_bytes + (H + Out_p) * 4
                + 2 * eff_block * In * mm_bytes
                + 2 * eff_block * Out_p * o_bytes
                + eff_block * (H + Out_p) * 4)
        vmem_limit = int(min(2 * need + (1 << 20), _V7X_VMEM_BYTES))

        out_p = pl.pallas_call(
            mlp_kernel,
            out_shape=jax.ShapeDtypeStruct((B, Out_p), out_dtype),
            grid=grid,
            in_specs=[
                # activations: one batch tile per grid step
                pl.BlockSpec((eff_block, In), lambda i: (i, 0)),
                # weights / biases: constant block index -> DMA'd once, resident
                pl.BlockSpec((In, H), lambda i: (0, 0)),
                pl.BlockSpec((1, H), lambda i: (0, 0)),
                pl.BlockSpec((H, Out_p), lambda i: (0, 0)),
                pl.BlockSpec((1, Out_p), lambda i: (0, 0)),
            ],
            out_specs=pl.BlockSpec((eff_block, Out_p), lambda i: (i, 0)),
            compiler_params=pltpu.CompilerParams(
                dimension_semantics=("parallel",),
                vmem_limit_bytes=vmem_limit),
        )(x, w1, b1, w2, b2)

    if keep_padded:
        return out_p          # lane-padded (B, Out_p) slab, no extra HBM copy
    return out_p[:, :Out]


if __name__ == "__main__":
    # Module hyperparameters (small, consistent with the nn.Module signature).
    input_size, hidden_size, output_size = 16, 32, 8

    key = jax.random.PRNGKey(0)
    kx, k1, kb1, k2, kb2, kx2 = jax.random.split(key, 6)

    # Deterministic parameter init (PyTorch nn.Linear-style uniform bounds).
    lim1 = 1.0 / jnp.sqrt(jnp.float32(input_size))
    lim2 = 1.0 / jnp.sqrt(jnp.float32(hidden_size))
    w1 = jax.random.uniform(k1, (input_size, hidden_size), jnp.float32, -lim1, lim1)
    b1 = jax.random.uniform(kb1, (hidden_size,), jnp.float32, -lim1, lim1)
    w2 = jax.random.uniform(k2, (hidden_size, output_size), jnp.float32, -lim2, lim2)
    b2 = jax.random.uniform(kb2, (output_size,), jnp.float32, -lim2, lim2)

    def ref_fn(x):
        return jnp.maximum(x @ w1 + b1[None, :], 0.0) @ w2 + b2[None, :]

    # Parameter prep done once (not per call).
    params_f32 = prepare_params(w1, b1, w2, b2)
    params_bf16 = prepare_params(w1, b1, w2, b2, matmul_dtype=jnp.bfloat16)

    # 1) Tiny batch -> single-block (no-grid) path, f32.
    x_small = jax.random.normal(kx, (8, input_size), jnp.float32)
    out_small = jax.block_until_ready(mlp_forward(x_small, params_f32))
    assert out_small.shape == (8, output_size)
    assert jnp.allclose(out_small, ref_fn(x_small), atol=1e-5, rtol=1e-5)

    # 2) Ragged batch -> batch-tiled, weight-stationary grid path with 2 parallel
    #    tiles and NO wrapper-side jnp.pad of x, f32.
    x_big = jax.random.normal(kx2, (300, input_size), jnp.float32)
    out_big = jax.block_until_ready(mlp_forward(x_big, params_f32))
    assert out_big.shape == (300, output_size)
    assert jnp.allclose(out_big, ref_fn(x_big), atol=1e-5, rtol=1e-5)

    # 3) bf16 MXU operands (valid on v5e/v6e/v7x; f32 accumulation and f32
    #    bias/ReLU), looser tolerance.
    out_bf16 = jax.block_until_ready(mlp_forward(x_big, params_bf16))
    assert out_bf16.shape == (300, output_size)
    assert jnp.allclose(out_bf16, ref_fn(x_big), atol=6e-2, rtol=6e-2)

    # 4) bf16 output writeback + padded layout kept for a downstream consumer
    #    (halves the lane-padded output HBM bytes, skips the slice copy).
    out_pad = jax.block_until_ready(
        mlp_forward(x_big, params_bf16, out_dtype=jnp.bfloat16, keep_padded=True))
    assert out_pad.shape == (300, 128)
    assert jnp.allclose(out_pad[:, :output_size].astype(jnp.float32),
                        ref_fn(x_big), atol=6e-2, rtol=6e-2)

    print("KERNEL_OK")
</pallas_src>

<mosaic_0001>
module attributes {stable_mosaic.version = 11 : i64} {
  func.func @mlp_kernel(%arg0: memref<8x16xf32, #tpu.memory_space<vmem>>, %arg1: memref<16x32xf32, #tpu.memory_space<vmem>>, %arg2: memref<1x32xf32, #tpu.memory_space<vmem>>, %arg3: memref<32x128xf32, #tpu.memory_space<vmem>>, %arg4: memref<1x128xf32, #tpu.memory_space<vmem>>, %arg5: memref<8x128xf32, #tpu.memory_space<vmem>>) attributes {dimension_semantics = [], scalar_prefetch = 0 : i64, scratch_operands = 0 : i64, tpu.core_type = #tpu.core_type<tc>} {
    %c0 = arith.constant 0 : index
    %c0_0 = arith.constant 0 : index
    %0 = vector.load %arg0[%c0, %c0_0] : memref<8x16xf32, #tpu.memory_space<vmem>>, vector<8x16xf32>
    %c0_1 = arith.constant 0 : index
    %c0_2 = arith.constant 0 : index
    %1 = vector.load %arg1[%c0_1, %c0_2] : memref<16x32xf32, #tpu.memory_space<vmem>>, vector<16x32xf32>
    %cst = arith.constant dense<0.000000e+00> : vector<8x32xf32>
    %2 = tpu.matmul %0, %1, %cst {dimension_numbers = #tpu.dot_dimension_numbers<[1], [0], [0], [1], [0, 0, 1, 1], [], []>} : vector<8x16xf32>, vector<16x32xf32>, vector<8x32xf32> -> vector<8x32xf32>
    %c0_3 = arith.constant 0 : index
    %c0_4 = arith.constant 0 : index
    %3 = vector.load %arg2[%c0_3, %c0_4] : memref<1x32xf32, #tpu.memory_space<vmem>>, vector<1x32xf32>
    %4 = vector.broadcast %3 : vector<1x32xf32> to vector<8x32xf32>
    %5 = arith.addf %2, %4 : vector<8x32xf32>
    %cst_5 = arith.constant 0.000000e+00 : f32
    %6 = vector.broadcast %cst_5 : f32 to vector<8x32xf32>
    %7 = arith.maximumf %5, %6 : vector<8x32xf32>
    %c0_6 = arith.constant 0 : index
    %c0_7 = arith.constant 0 : index
    %8 = vector.load %arg3[%c0_6, %c0_7] : memref<32x128xf32, #tpu.memory_space<vmem>>, vector<32x128xf32>
    %cst_8 = arith.constant dense<0.000000e+00> : vector<8x128xf32>
    %9 = tpu.matmul %7, %8, %cst_8 {dimension_numbers = #tpu.dot_dimension_numbers<[1], [0], [0], [1], [0, 0, 1, 1], [], []>} : vector<8x32xf32>, vector<32x128xf32>, vector<8x128xf32> -> vector<8x128xf32>
    %c0_9 = arith.constant 0 : index
    %c0_10 = arith.constant 0 : index
    %10 = vector.load %arg4[%c0_9, %c0_10] : memref<1x128xf32, #tpu.memory_space<vmem>>, vector<1x128xf32>
    %11 = vector.broadcast %10 : vector<1x128xf32> to vector<8x128xf32>
    %12 = arith.addf %9, %11 : vector<8x128xf32>
    %c0_11 = arith.constant 0 : index
    %c0_12 = arith.constant 0 : index
    %13 = vector.load %arg5[%c0_11, %c0_12] : memref<8x128xf32, #tpu.memory_space<vmem>>, vector<8x128xf32>
    tpu.vector_store %arg5[%c0_11, %c0_12], %12 {strides = array<i32>} : memref<8x128xf32, #tpu.memory_space<vmem>>, vector<8x128xf32>,
    return
  }
}

</mosaic_0001>

<llo_original>
// kernel: tpu_custom_call.1
$region0: #{tpu_custom_call.1}
  #allocation0 [shape = 'u32[]', space=smem, size = 0x4, offset = 0x4, fixed_abs, tag = 'smem constant byte address 0x4 - core index']
  #allocation1 [shape = 'u32[144,128]{1,0:T(1,128)}', space=vmem, size = 0x12000, scoped, tag = 'internal scratch']
  %s0 = inlined_call_operand.hbm [shape: f32[8,16], index: 0, kind: input, shape index: {}]
  %s1 = inlined_call_operand.hbm [shape: f32[16,32], index: 1, kind: input, shape index: {}]
  %s2 = inlined_call_operand.vmem [shape: f32[1,32], index: 2, kind: input, shape index: {}]
  %s3 = inlined_call_operand.hbm [shape: f32[32,128], index: 3, kind: input, shape index: {}]
  %s4 = inlined_call_operand.vmem [shape: f32[1,128], index: 4, kind: input, shape index: {}]
  %s5 = inlined_call_operand.hbm [shape: f32[8,128], index: 5, kind: output, shape index: {}]
  %s6 = sld [smem:[#allocation0]]
  $region42: #{tpu_custom_call.1} parent=0
    _
  %s8 = ssub.s32 1, %s6
  %s9 = scalar_select 0, %s8, %s6
  $region1: #{tpu_custom_call.1} parent=0
    #allocation2 [shape = 'u8[4096]{0}', space=vmem, size = 0x1000, scoped, tag = 'input window, operand 0, single buffered']
    #allocation3 [shape = 's32[1]{0}', space=sflag, size = 0x4, scoped, tag = 'scoped memory for tpu_custom_call.1']
    #allocation4 [shape = 's32[1]{0}', space=sflag, size = 0x4, scoped, tag = 'scoped memory for tpu_custom_call.1']
    #allocation5 [shape = 'u8[8192]{0}', space=vmem, size = 0x2000, scoped, tag = 'input window, operand 1, single buffered']
    #allocation6 [shape = 's32[1]{0}', space=sflag, size = 0x4, scoped, tag = 'scoped memory for tpu_custom_call.1']
    #allocation7 [shape = 'u8[16384]{0}', space=vmem, size = 0x4000, scoped, tag = 'input window, operand 3, single buffered']
    #allocation8 [shape = 'u8[4096]{0}', space=vmem, size = 0x1000, scoped, tag = 'output window, operand 0, single buffered']
    %10 = vsyncpa [#allocation3], 0
    %11 = vsyncpa [#allocation6], 0
    %12 = vsyncpa [#allocation4], 0
    // Predicated region
    $region2: #{tpu_custom_call.1} parent=1 // pred_check
      _
    $region3: #{tpu_custom_call.1} parent=1 // pred_check_branch
      %14 = sbr.rel (0) target = $region5
    $region4: #{tpu_custom_call.1} parent=1 // pred_region
      %s16 = ssub.s32 128, 128
      %17 = vsyncadd [#allocation3], %s16
      %s19 = sshll.u32 [#allocation2], 4
      %s20 = int_to_ptr.vmem [resolvable:$true] %s19
      %22 = dma.hbm_to_vmem [thread:$0]  %s0, 128, %s20, [#allocation3]
    $region5: #{tpu_custom_call.1} parent=1 // pred_fallthru
      _
    // Predicated region
    $region6: #{tpu_custom_call.1} parent=1 // pred_check
      _
    $region7: #{tpu_custom_call.1} parent=1 // pred_check_branch
      %24 = sbr.rel (0) target = $region9
    $region8: #{tpu_custom_call.1} parent=1 // pred_region
      %s26 = ssub.s32 256, 256
      %27 = vsyncadd [#allocation6], %s26
      %s28 = sshll.u32 [#allocation5], 4
      %s29 = int_to_ptr.vmem [resolvable:$true] %s28
      %34 = dma.hbm_to_vmem [thread:$0]  %s1, 256, %s29, [#allocation6], 128, 128, 8
    $region9: #{tpu_custom_call.1} parent=1 // pred_fallthru
      _
    // Predicated region
    $region10: #{tpu_custom_call.1} parent=1 // pred_check
      _
    $region11: #{tpu_custom_call.1} parent=1 // pred_check_branch
      %36 = sbr.rel (0) target = $region13
    $region12: #{tpu_custom_call.1} parent=1 // pred_region
      _
    $region13: #{tpu_custom_call.1} parent=1 // pred_fallthru
      _
    // Predicated region
    $region14: #{tpu_custom_call.1} parent=1 // pred_check
      _
    $region15: #{tpu_custom_call.1} parent=1 // pred_check_branch
      %38 = sbr.rel (0) target = $region17
    $region16: #{tpu_custom_call.1} parent=1 // pred_region
      %s40 = ssub.s32 512, 512
      %41 = vsyncadd [#allocation6], %s40
      %s42 = sshll.u32 [#allocation7], 4
      %s43 = int_to_ptr.vmem [resolvable:$true] %s42
      %48 = dma.hbm_to_vmem [thread:$0]  %s3, 512, %s43, [#allocation6], 128, 128, 8
    $region17: #{tpu_custom_call.1} parent=1 // pred_fallthru
      _
    // Predicated region
    $region18: #{tpu_custom_call.1} parent=1 // pred_check
      _
    $region19: #{tpu_custom_call.1} parent=1 // pred_check_branch
      %50 = sbr.rel (0) target = $region21
    $region20: #{tpu_custom_call.1} parent=1 // pred_region
      _
    $region21: #{tpu_custom_call.1} parent=1 // pred_fallthru
      _
    // Predicated region
    $region22: #{tpu_custom_call.1} parent=1 // pred_check
      _
    $region23: #{tpu_custom_call.1} parent=1 // pred_check_branch
      %52 = sbr.rel (0) target = $region25
    $region24: #{tpu_custom_call.1} parent=1 // pred_region
      %53 = dma.done [#allocation3], 128
    $region25: #{tpu_custom_call.1} parent=1 // pred_fallthru
      _
    // Predicated region
    $region26: #{tpu_custom_call.1} parent=1 // pred_check
      _
    $region27: #{tpu_custom_call.1} parent=1 // pred_check_branch
      %55 = sbr.rel (0) target = $region29
    $region28: #{tpu_custom_call.1} parent=1 // pred_region
      %56 = dma.done [#allocation6], 256
    $region29: #{tpu_custom_call.1} parent=1 // pred_fallthru
      _
    // Predicated region
    $region30: #{tpu_custom_call.1} parent=1 // pred_check
      _
    $region31: #{tpu_custom_call.1} parent=1 // pred_check_branch
      %58 = sbr.rel (0) target = $region33
    $region32: #{tpu_custom_call.1} parent=1 // pred_region
      %59 = dma.done [#allocation6], 512
    $region33: #{tpu_custom_call.1} parent=1 // pred_fallthru
      _
    %v60 = vld [vmem:[#allocation2] sm:$0xff]
    %v61 = vld [vmem:[#allocation5] sm:$0xff]
    %v62 = vld [vmem:[#allocation5 + $0x8] sm:$0xff]
    %v63 = vld [vmem:[%s2] sm:$0x1]
    %v65 = vlaneseq
    %v66 = vshrl.u32 %v65, 7
    %v67 = vsub.s32 0, %v66
    %v68 = vrot.slane %v63, %v67
    %vm70 = vcmask 130048
    %v72 = vsel %vm70, %v60, 0
    %74 = vmatprep.subr.mxu0 0.0
    %75 = vmatpush1.msra.mxu0 %v61
    %76 = vmatprep.subr.mxu0 0.0
    %77 = vmatpush1.msra.mxu0 %v62
    %78 = vmatprep.subr.mxu0 0.0
    %79 = vmatpush1.msra.mxu0 0.0
    %80 = vmatprep.subr.mxu0 0.0
    %81 = vmatpush1.msra.mxu0 0.0
    %82 = vmatprep.subr.mxu0 0.0
    %83 = vmatpush1.msra.mxu0 0.0
    %84 = vmatprep.subr.mxu0 0.0
    %85 = vmatpush1.msra.mxu0 0.0
    %86 = vmatprep.subr.mxu0 0.0
    %87 = vmatpush1.msra.mxu0 0.0
    %88 = vmatprep.subr.mxu0 0.0
    %89 = vmatpush1.msra.mxu0 0.0
    %90 = vmatprep.subr.mxu0 0.0
    %91 = vmatpush1.msra.mxu0 0.0
    %92 = vmatprep.subr.mxu0 0.0
    %93 = vmatpush1.msra.mxu0 0.0
    %94 = vmatprep.subr.mxu0 0.0
    %95 = vmatpush1.msra.mxu0 0.0
    %96 = vmatprep.subr.mxu0 0.0
    %97 = vmatpush1.msra.mxu0 0.0
    %98 = vmatprep.subr.mxu0 0.0
    %99 = vmatpush1.msra.mxu0 0.0
    %100 = vmatprep.subr.mxu0 0.0
    %101 = vmatpush1.msra.mxu0 0.0
    %102 = vmatprep.subr.mxu0 0.0
    %103 = vmatpush1.msra.mxu0 0.0
    %104 = vmatprep.subr.mxu0 0.0
    %105 = vmatpush1.msra.mxu0 0.0
    %106 = vmatprep.subr.mxu0 0.0
    %107 = vmatpush1.msra.mxu0 0.0
    %108 = vmatprep.subr.mxu0 0.0
    %109 = vmatpush1.msra.mxu0 0.0
    %110 = vmatprep.subr.mxu0 0.0
    %111 = vmatpush1.msra.mxu0 0.0
    %112 = vmatprep.subr.mxu0 0.0
    %113 = vmatpush1.msra.mxu0 0.0
    %114 = vmatprep.subr.mxu0 0.0
    %115 = vmatpush1.msra.mxu0 0.0
    %116 = vmatprep.subr.mxu0 0.0
    %117 = vmatpush1.msra.mxu0 0.0
    %118 = vmatprep.subr.mxu0 0.0
    %119 = vmatpush1.msra.mxu0 0.0
    %120 = vmatprep.subr.mxu0 0.0
    %121 = vmatpush1.msra.mxu0 0.0
    %122 = vmatprep.subr.mxu0 0.0
    %123 = vmatpush1.msra.mxu0 0.0
    %124 = vmatprep.subr.mxu0 0.0
    %125 = vmatpush1.msra.mxu0 0.0
    %126 = vmatprep.subr.mxu0 0.0
    %127 = vmatpush1.msra.mxu0 0.0
    %128 = vmatprep.subr.mxu0 0.0
    %129 = vmatpush1.msra.mxu0 0.0
    %130 = vmatprep.subr.mxu0 0.0
    %131 = vmatpush1.msra.mxu0 0.0
    %132 = vmatprep.subr.mxu0 0.0
    %133 = vmatpush1.msra.mxu0 0.0
    %134 = vmatprep.subr.mxu0 0.0
    %135 = vmatpush1.msra.mxu0 0.0
    %136 = vmatprep.subr.mxu0 0.0
    %137 = vmatpush1.msra.mxu0 0.0
    %138 = vmatprep.mubr.f32.mxu0 0.0
    %139 = vmatmul.mubr.f32.gmra.mrb[0].mxu0 %v72
    %v140 = vpop.f32.mrb[0].mxu0
    %v141 = vadd.f32 %v68, %v140
    %v142 = vpop.f32.mrb[0].mxu0
    %143 = vdwg.mxu0
    %v144 = vmax.f32 %v141, 0.0
    %v145 = vld [vmem:[#allocation7] sm:$0xff]
    %v146 = vld [vmem:[#allocation7 + $0x8] sm:$0xff]
    %v147 = vld [vmem:[#allocation7 + $0x10] sm:$0xff]
    %v148 = vld [vmem:[#allocation7 + $0x18] sm:$0xff]
    %v149 = vld [vmem:[%s4] sm:$0x1]
    %v151 = vlaneseq
    %v152 = vshrl.u32 %v151, 7
    %v153 = vsub.s32 0, %v152
    %v154 = vrot.slane %v149, %v153
    %vm156 = vcmask 261120
    %v158 = vsel %vm156, %v144, 0
    %160 = vmatprep.subr.mxu0 0.0
    %161 = vmatpush1.msra.mxu0 %v145
    %162 = vmatprep.subr.mxu0 0.0
    %163 = vmatpush1.msra.mxu0 %v146
    %164 = vmatprep.subr.mxu0 0.0
    %165 = vmatpush1.msra.mxu0 %v147
    %166 = vmatprep.subr.mxu0 0.0
    %167 = vmatpush1.msra.mxu0 %v148
    %168 = vmatprep.subr.mxu0 0.0
    %169 = vmatpush1.msra.mxu0 0.0
    %170 = vmatprep.subr.mxu0 0.0
    %171 = vmatpush1.msra.mxu0 0.0
    %172 = vmatprep.subr.mxu0 0.0
    %173 = vmatpush1.msra.mxu0 0.0
    %174 = vmatprep.subr.mxu0 0.0
    %175 = vmatpush1.msra.mxu0 0.0
    %176 = vmatprep.subr.mxu0 0.0
    %177 = vmatpush1.msra.mxu0 0.0
    %178 = vmatprep.subr.mxu0 0.0
    %179 = vmatpush1.msra.mxu0 0.0
    %180 = vmatprep.subr.mxu0 0.0
    %181 = vmatpush1.msra.mxu0 0.0
    %182 = vmatprep.subr.mxu0 0.0
    %183 = vmatpush1.msra.mxu0 0.0
    %184 = vmatprep.subr.mxu0 0.0
    %185 = vmatpush1.msra.mxu0 0.0
    %186 = vmatprep.subr.mxu0 0.0
    %187 = vmatpush1.msra.mxu0 0.0
    %188 = vmatprep.subr.mxu0 0.0
    %189 = vmatpush1.msra.mxu0 0.0
    %190 = vmatprep.subr.mxu0 0.0
    %191 = vmatpush1.msra.mxu0 0.0
    %192 = vmatprep.subr.mxu0 0.0
    %193 = vmatpush1.msra.mxu0 0.0
    %194 = vmatprep.subr.mxu0 0.0
    %195 = vmatpush1.msra.mxu0 0.0
    %196 = vmatprep.subr.mxu0 0.0
    %197 = vmatpush1.msra.mxu0 0.0
    %198 = vmatprep.subr.mxu0 0.0
    %199 = vmatpush1.msra.mxu0 0.0
    %200 = vmatprep.subr.mxu0 0.0
    %201 = vmatpush1.msra.mxu0 0.0
    %202 = vmatprep.subr.mxu0 0.0
    %203 = vmatpush1.msra.mxu0 0.0
    %204 = vmatprep.subr.mxu0 0.0
    %205 = vmatpush1.msra.mxu0 0.0
    %206 = vmatprep.subr.mxu0 0.0
    %207 = vmatpush1.msra.mxu0 0.0
    %208 = vmatprep.subr.mxu0 0.0
    %209 = vmatpush1.msra.mxu0 0.0
    %210 = vmatprep.subr.mxu0 0.0
    %211 = vmatpush1.msra.mxu0 0.0
    %212 = vmatprep.subr.mxu0 0.0
    %213 = vmatpush1.msra.mxu0 0.0
    %214 = vmatprep.subr.mxu0 0.0
    %215 = vmatpush1.msra.mxu0 0.0
    %216 = vmatprep.subr.mxu0 0.0
    %217 = vmatpush1.msra.mxu0 0.0
    %218 = vmatprep.subr.mxu0 0.0
    %219 = vmatpush1.msra.mxu0 0.0
    %220 = vmatprep.subr.mxu0 0.0
    %221 = vmatpush1.msra.mxu0 0.0
    %222 = vmatprep.subr.mxu0 0.0
    %223 = vmatpush1.msra.mxu0 0.0
    %224 = vmatprep.mubr.f32.mxu0 0.0
    %225 = vmatmul.mubr.f32.gmra.mrb[0].mxu0 %v158
    %v226 = vpop.f32.mrb[0].mxu0
    %v227 = vadd.f32 %v154, %v226
    %v228 = vpop.f32.mrb[0].mxu0
    %229 = vdwg.mxu0
    %230 = vst [vmem:[#allocation8] sm:$0xff] %v227
    // Predicated region
    $region34: #{tpu_custom_call.1} parent=1 // pred_check
      _
    $region35: #{tpu_custom_call.1} parent=1 // pred_check_branch
      %232 = sbr.rel (0) target = $region37
    $region36: #{tpu_custom_call.1} parent=1 // pred_region
      %s234 = ssub.s32 128, 128
      %235 = vsyncadd [#allocation4], %s234
      %s237 = sshll.u32 [#allocation8], 4
      %s238 = int_to_ptr.vmem [resolvable:$true] %s237
      %240 = dma.vmem_to_hbm [thread:$0]  %s238, 128, %s5, [#allocation4]
    $region37: #{tpu_custom_call.1} parent=1 // pred_fallthru
      _
    // Predicated region
    $region38: #{tpu_custom_call.1} parent=1 // pred_check
      _
    $region39: #{tpu_custom_call.1} parent=1 // pred_check_branch
      %242 = sbr.rel (0) target = $region41
    $region40: #{tpu_custom_call.1} parent=1 // pred_region
      %243 = dma.done [#allocation4], 128
    $region41: #{tpu_custom_call.1} parent=1 // pred_fallthru
      _
    %244 = vsyncpa [#allocation3], 1
    %245 = vsyncpa [#allocation6], 1
    %246 = vsyncpa [#allocation4], 1

</llo_original>
